<compile_context>
chip_gen: v6e
topology: v6e:2x2x1
jax: 0.10.0
libtpu: 0.0.40
codegen_flags: <defaults>
</compile_context>

<pallas_src>
import functools

import jax
import jax.numpy as jnp
from jax.experimental import pallas as pl
from jax.experimental.pallas import tpu as pltpu

_LANE = 128
_SUBLANE = 8


def _round_up(n: int, m: int) -> int:
    return ((n + m - 1) // m) * m


def _pad2d(a, rows: int, cols: int, dtype=None):
    dtype = a.dtype if dtype is None else dtype
    r, c = a.shape
    out = jnp.zeros((rows, cols), dtype)
    return out.at[:r, :c].set(a.astype(dtype))


def _make_decoder_kernel(num_hidden: int, batch_true: int,
                         eps: float = 1e-5, neg_slope: float = 0.01):
    """Kernel closed over the (static) layer count and true (unpadded) batch size.

    Ref layout (positional):
      x_ref,
      [w_i, gamma_beta_i] * num_hidden,   # w_i: (in_pad, out_pad) bf16, gb_i: (2, out_pad) f32
      w_head, b_head,                     # (in_pad, out_pad) bf16, (1, out_pad) f32
      out_ref
    """
    inv_b = 1.0 / float(batch_true)

    def kernel(*refs):
        x_ref = refs[0]
        out_ref = refs[-1]
        p = refs[1:-1]

        h = x_ref[...]                                   # (Bp, in_pad), f32
        bp = h.shape[0]

        # Row mask folded into the BN-stats matmuls (padded batch rows contribute 0).
        if bp == batch_true:
            mask_row = jnp.ones((1, bp), jnp.float32)
        else:
            col_ids = jax.lax.broadcasted_iota(jnp.int32, (1, bp), 1)
            mask_row = (col_ids < batch_true).astype(jnp.float32)

        for i in range(num_hidden):
            w = p[2 * i][...]                            # (in_pad, out_pad) bf16
            gb = p[2 * i + 1][...]                       # (2, out_pad) f32
            gamma = gb[0:1, :]
            beta = gb[1:2, :]

            # Linear (no bias): bf16 operands on the MXU, f32 accumulation.
            h = jnp.dot(h.astype(jnp.bfloat16), w,
                        preferred_element_type=jnp.float32)

            # BatchNorm1d (training-mode) statistics on the MXU instead of the XLU:
            # masked row-vector dots give sum and sum-of-squares in one pass each.
            s = jnp.dot(mask_row, h, preferred_element_type=jnp.float32)
            ss = jnp.dot(mask_row, h * h, preferred_element_type=jnp.float32)
            mean = s * inv_b
            var = jnp.maximum(ss * inv_b - mean * mean, 0.0)

            # Fold normalize + affine into one scale/shift pair.
            # (gamma/beta zero-padded lanes -> scale = shift = 0 -> padded lanes stay 0.)
            scale = gamma * jax.lax.rsqrt(var + eps)
            shift = beta - mean * scale
            h = h * scale + shift

            # LeakyReLU (negative_slope = 0.01) as a single max.
            h = jnp.maximum(h, neg_slope * h)

        w_head = p[2 * num_hidden][...]                  # (in_pad, out_pad) bf16
        b_head = p[2 * num_hidden + 1][...]              # (1, out_pad) f32
        y = jnp.dot(h.astype(jnp.bfloat16), w_head,
                    preferred_element_type=jnp.float32) + b_head
        out_ref[...] = jax.nn.sigmoid(y).astype(out_ref.dtype)

    return kernel


def init_params(key, layers, last_dim):
    """Deterministic PyTorch-style init (unpadded, f32). Weights stored as (in_dim, out_dim)."""
    params = []
    for in_dim, out_dim in zip(layers, layers[1:]):
        key, kw = jax.random.split(key)
        bound = 1.0 / float(in_dim) ** 0.5
        w = jax.random.uniform(kw, (in_dim, out_dim), jnp.float32, -bound, bound)
        gamma = jnp.ones((1, out_dim), jnp.float32)      # BN affine init (PyTorch default)
        beta = jnp.zeros((1, out_dim), jnp.float32)
        params += [w, gamma, beta]
    in_dim = layers[-1]
    key, kw, kb = jax.random.split(key, 3)
    bound = 1.0 / float(in_dim) ** 0.5
    w_head = jax.random.uniform(kw, (in_dim, last_dim), jnp.float32, -bound, bound)
    b_head = jax.random.uniform(kb, (1, last_dim), jnp.float32, -bound, bound)
    params += [w_head, b_head]
    return params


def pack_params(params, layers, last_dim):
    """Zero-pad feature dims to 128 lanes; weights -> bf16 (MXU operands),
    (gamma, beta) packed into one (2, out_pad) f32 array per layer."""
    num_hidden = len(layers) - 1
    packed = []
    for i in range(num_hidden):
        w, gamma, beta = params[3 * i], params[3 * i + 1], params[3 * i + 2]
        in_dim, out_dim = w.shape
        in_pad, out_pad = _round_up(in_dim, _LANE), _round_up(out_dim, _LANE)
        packed.append(_pad2d(w, in_pad, out_pad, jnp.bfloat16))
        gb = jnp.zeros((2, out_pad), jnp.float32)
        gb = gb.at[0, :out_dim].set(gamma.reshape(-1))
        gb = gb.at[1, :out_dim].set(beta.reshape(-1))
        packed.append(gb)
    w_head, b_head = params[3 * num_hidden], params[3 * num_hidden + 1]
    in_dim, out_dim = w_head.shape
    in_pad, out_pad = _round_up(in_dim, _LANE), _round_up(out_dim, _LANE)
    packed.append(_pad2d(w_head, in_pad, out_pad, jnp.bfloat16))
    packed.append(_pad2d(b_head, 1, out_pad, jnp.float32))
    return packed


@functools.partial(jax.jit, static_argnames=("layers", "last_dim"))
def base_decoder_forward(x, packed_params, *, layers, last_dim):
    num_hidden = len(layers) - 1
    batch = x.shape[0]
    batch_p = _round_up(max(batch, _SUBLANE), _SUBLANE)
    in_pad = _round_up(layers[0], _LANE)
    out_pad_head = _round_up(last_dim, _LANE)

    x_p = _pad2d(x.astype(jnp.float32), batch_p, in_pad)

    kernel = _make_decoder_kernel(num_hidden, batch)

    # ---- static cost / VMEM accounting (shapes are compile-time constants) ----
    dims_pad = [_round_up(d, _LANE) for d in layers] + [out_pad_head]
    flops = 2 * batch_p * sum(a * b for a, b in zip(dims_pad[:-1], dims_pad[1:]))
    flops += 2 * 2 * batch_p * sum(dims_pad[1:-1])                   # stats matmuls
    transcendentals = batch_p * out_pad_head + sum(dims_pad[1:-1])   # sigmoid + rsqrt
    param_bytes = sum(int(p.size) * p.dtype.itemsize for p in packed_params)
    io_bytes = 4 * batch_p * (in_pad + out_pad_head) + param_bytes
    act_bytes = 4 * batch_p * max(dims_pad)
    footprint = io_bytes + 4 * act_bytes             # params + I/O + a few live activations

    # Generation-aware VMEM cap: physical capacity minus headroom, never below 4 MiB.
    try:
        vmem_cap = int(pltpu.get_tpu_info().vmem_capacity_bytes)
    except Exception:
        vmem_cap = 64 << 20                          # conservative (v7x per-TC) fallback
    vmem_limit = int(min(vmem_cap - (16 << 20), max(4 << 20, 2 * footprint)))
    vmem_limit = max(vmem_limit, 4 << 20)

    cost = pl.CostEstimate(flops=int(flops),
                           transcendentals=int(transcendentals),
                           bytes_accessed=int(io_bytes))

    vmem_spec = pl.BlockSpec(memory_space=pltpu.MemorySpace.VMEM)
    n_in = 1 + len(packed_params)

    out_p = pl.pallas_call(
        kernel,
        out_shape=jax.ShapeDtypeStruct((batch_p, out_pad_head), jnp.float32),
        in_specs=[vmem_spec] * n_in,
        out_specs=vmem_spec,
        compiler_params=pltpu.CompilerParams(
            vmem_limit_bytes=vmem_limit,
            # Let XLA fuse the x pad/cast into the custom call (latency-bound shapes).
            allow_input_fusion=[True] + [False] * len(packed_params),
        ),
        cost_estimate=cost,
    )(x_p, *packed_params)

    # Slice padded batch rows / output lanes back to the true shape.
    return out_p[:batch, :last_dim]


def _reference_forward(x, params, num_hidden, eps=1e-5, neg_slope=0.01):
    """Pure-JAX f32 reference matching PyTorch train()-mode semantics."""
    h = x.astype(jnp.float32)
    for i in range(num_hidden):
        w, gamma, beta = params[3 * i], params[3 * i + 1], params[3 * i + 2]
        h = h @ w
        mean = jnp.mean(h, axis=0, keepdims=True)
        var = jnp.mean((h - mean) ** 2, axis=0, keepdims=True)
        h = (h - mean) / jnp.sqrt(var + eps) * gamma + beta
        h = jnp.where(h > 0, h, neg_slope * h)
    y = h @ params[3 * num_hidden] + params[3 * num_hidden + 1]
    return jax.nn.sigmoid(y)


if __name__ == "__main__":
    # Small shapes consistent with the module's forward:
    # layers = [32, 64, 48], last_dim = 16, batch = 8  -> x: (8, 32)
    layers = (32, 64, 48)
    last_dim = 16
    batch = 8
    num_hidden = len(layers) - 1

    key = jax.random.PRNGKey(0)
    key, kx = jax.random.split(key)
    x = jax.random.normal(kx, (batch, layers[0]), jnp.float32)
    params = init_params(key, list(layers), last_dim)
    packed = pack_params(params, list(layers), last_dim)

    out = base_decoder_forward(x, packed, layers=layers, last_dim=last_dim)
    out = jax.block_until_ready(out)

    ref = _reference_forward(x, params, num_hidden)
    assert out.shape == (batch, last_dim)
    # bf16 MXU operands (f32 accumulation / BN math) -> relaxed tolerance vs f32 reference.
    assert jnp.allclose(out, ref, atol=2e-2, rtol=2e-2), float(jnp.max(jnp.abs(out - ref)))

    print("KERNEL_OK")
</pallas_src>

<mosaic_0001>
module attributes {stable_mosaic.version = 11 : i64} {
  func.func @kernel(%arg0: memref<8x128xf32, #tpu.memory_space<vmem>>, %arg1: memref<128x128xbf16, #tpu.memory_space<vmem>>, %arg2: memref<2x128xf32, #tpu.memory_space<vmem>>, %arg3: memref<128x128xbf16, #tpu.memory_space<vmem>>, %arg4: memref<2x128xf32, #tpu.memory_space<vmem>>, %arg5: memref<128x128xbf16, #tpu.memory_space<vmem>>, %arg6: memref<1x128xf32, #tpu.memory_space<vmem>>, %arg7: memref<8x128xf32, #tpu.memory_space<vmem>>) attributes {dimension_semantics = [], scalar_prefetch = 0 : i64, scratch_operands = 0 : i64, tpu.core_type = #tpu.core_type<tc>} {
    %c0 = arith.constant 0 : index
    %c0_0 = arith.constant 0 : index
    %0 = vector.load %arg0[%c0, %c0_0] : memref<8x128xf32, #tpu.memory_space<vmem>>, vector<8x128xf32>
    %cst = arith.constant 1.000000e+00 : f32
    %1 = vector.broadcast %cst : f32 to vector<1x8xf32>
    %c0_1 = arith.constant 0 : index
    %c0_2 = arith.constant 0 : index
    %2 = vector.load %arg1[%c0_1, %c0_2] : memref<128x128xbf16, #tpu.memory_space<vmem>>, vector<128x128xbf16>
    %c0_3 = arith.constant 0 : index
    %c0_4 = arith.constant 0 : index
    %3 = vector.load %arg2[%c0_3, %c0_4] : memref<2x128xf32, #tpu.memory_space<vmem>>, vector<2x128xf32>
    %4 = vector.extract_strided_slice %3 {offsets = [0, 0], sizes = [1, 128], strides = [1, 1]} : vector<2x128xf32> to vector<1x128xf32>
    %5 = vector.extract_strided_slice %3 {offsets = [1, 0], sizes = [1, 128], strides = [1, 1]} : vector<2x128xf32> to vector<1x128xf32>
    %6 = arith.truncf %0 : vector<8x128xf32> to vector<8x128xbf16>
    %cst_5 = arith.constant dense<0.000000e+00> : vector<8x128xf32>
    %7 = tpu.matmul %6, %2, %cst_5 {dimension_numbers = #tpu.dot_dimension_numbers<[1], [0], [0], [1], [0, 0, 1, 1], [], []>} : vector<8x128xbf16>, vector<128x128xbf16>, vector<8x128xf32> -> vector<8x128xf32>
    %cst_6 = arith.constant dense<0.000000e+00> : vector<1x128xf32>
    %8 = tpu.matmul %1, %7, %cst_6 {dimension_numbers = #tpu.dot_dimension_numbers<[1], [0], [0], [1], [0, 0, 1, 1], [], []>} : vector<1x8xf32>, vector<8x128xf32>, vector<1x128xf32> -> vector<1x128xf32>
    %9 = arith.mulf %7, %7 : vector<8x128xf32>
    %cst_7 = arith.constant dense<0.000000e+00> : vector<1x128xf32>
    %10 = tpu.matmul %1, %9, %cst_7 {dimension_numbers = #tpu.dot_dimension_numbers<[1], [0], [0], [1], [0, 0, 1, 1], [], []>} : vector<1x8xf32>, vector<8x128xf32>, vector<1x128xf32> -> vector<1x128xf32>
    %cst_8 = arith.constant 1.250000e-01 : f32
    %11 = vector.broadcast %cst_8 : f32 to vector<1x128xf32>
    %12 = arith.mulf %8, %11 : vector<1x128xf32>
    %cst_9 = arith.constant 1.250000e-01 : f32
    %13 = vector.broadcast %cst_9 : f32 to vector<1x128xf32>
    %14 = arith.mulf %10, %13 : vector<1x128xf32>
    %15 = arith.mulf %12, %12 : vector<1x128xf32>
    %16 = arith.subf %14, %15 : vector<1x128xf32>
    %cst_10 = arith.constant 0.000000e+00 : f32
    %17 = vector.broadcast %cst_10 : f32 to vector<1x128xf32>
    %18 = arith.maximumf %16, %17 : vector<1x128xf32>
    %cst_11 = arith.constant 9.99999974E-6 : f32
    %19 = vector.broadcast %cst_11 : f32 to vector<1x128xf32>
    %20 = arith.addf %18, %19 : vector<1x128xf32>
    %21 = math.rsqrt %20 : vector<1x128xf32>
    %22 = arith.mulf %4, %21 : vector<1x128xf32>
    %23 = arith.mulf %12, %22 : vector<1x128xf32>
    %24 = arith.subf %5, %23 : vector<1x128xf32>
    %25 = vector.broadcast %22 : vector<1x128xf32> to vector<8x128xf32>
    %26 = arith.mulf %7, %25 : vector<8x128xf32>
    %27 = vector.broadcast %24 : vector<1x128xf32> to vector<8x128xf32>
    %28 = arith.addf %26, %27 : vector<8x128xf32>
    %cst_12 = arith.constant 0.00999999977 : f32
    %29 = vector.broadcast %cst_12 : f32 to vector<8x128xf32>
    %30 = arith.mulf %29, %28 : vector<8x128xf32>
    %31 = arith.maximumf %28, %30 : vector<8x128xf32>
    %c0_13 = arith.constant 0 : index
    %c0_14 = arith.constant 0 : index
    %32 = vector.load %arg3[%c0_13, %c0_14] : memref<128x128xbf16, #tpu.memory_space<vmem>>, vector<128x128xbf16>
    %c0_15 = arith.constant 0 : index
    %c0_16 = arith.constant 0 : index
    %33 = vector.load %arg4[%c0_15, %c0_16] : memref<2x128xf32, #tpu.memory_space<vmem>>, vector<2x128xf32>
    %34 = vector.extract_strided_slice %33 {offsets = [0, 0], sizes = [1, 128], strides = [1, 1]} : vector<2x128xf32> to vector<1x128xf32>
    %35 = vector.extract_strided_slice %33 {offsets = [1, 0], sizes = [1, 128], strides = [1, 1]} : vector<2x128xf32> to vector<1x128xf32>
    %36 = arith.truncf %31 : vector<8x128xf32> to vector<8x128xbf16>
    %cst_17 = arith.constant dense<0.000000e+00> : vector<8x128xf32>
    %37 = tpu.matmul %36, %32, %cst_17 {dimension_numbers = #tpu.dot_dimension_numbers<[1], [0], [0], [1], [0, 0, 1, 1], [], []>} : vector<8x128xbf16>, vector<128x128xbf16>, vector<8x128xf32> -> vector<8x128xf32>
    %cst_18 = arith.constant dense<0.000000e+00> : vector<1x128xf32>
    %38 = tpu.matmul %1, %37, %cst_18 {dimension_numbers = #tpu.dot_dimension_numbers<[1], [0], [0], [1], [0, 0, 1, 1], [], []>} : vector<1x8xf32>, vector<8x128xf32>, vector<1x128xf32> -> vector<1x128xf32>
    %39 = arith.mulf %37, %37 : vector<8x128xf32>
    %cst_19 = arith.constant dense<0.000000e+00> : vector<1x128xf32>
    %40 = tpu.matmul %1, %39, %cst_19 {dimension_numbers = #tpu.dot_dimension_numbers<[1], [0], [0], [1], [0, 0, 1, 1], [], []>} : vector<1x8xf32>, vector<8x128xf32>, vector<1x128xf32> -> vector<1x128xf32>
    %cst_20 = arith.constant 1.250000e-01 : f32
    %41 = vector.broadcast %cst_20 : f32 to vector<1x128xf32>
    %42 = arith.mulf %38, %41 : vector<1x128xf32>
    %cst_21 = arith.constant 1.250000e-01 : f32
    %43 = vector.broadcast %cst_21 : f32 to vector<1x128xf32>
    %44 = arith.mulf %40, %43 : vector<1x128xf32>
    %45 = arith.mulf %42, %42 : vector<1x128xf32>
    %46 = arith.subf %44, %45 : vector<1x128xf32>
    %cst_22 = arith.constant 0.000000e+00 : f32
    %47 = vector.broadcast %cst_22 : f32 to vector<1x128xf32>
    %48 = arith.maximumf %46, %47 : vector<1x128xf32>
    %cst_23 = arith.constant 9.99999974E-6 : f32
    %49 = vector.broadcast %cst_23 : f32 to vector<1x128xf32>
    %50 = arith.addf %48, %49 : vector<1x128xf32>
    %51 = math.rsqrt %50 : vector<1x128xf32>
    %52 = arith.mulf %34, %51 : vector<1x128xf32>
    %53 = arith.mulf %42, %52 : vector<1x128xf32>
    %54 = arith.subf %35, %53 : vector<1x128xf32>
    %55 = vector.broadcast %52 : vector<1x128xf32> to vector<8x128xf32>
    %56 = arith.mulf %37, %55 : vector<8x128xf32>
    %57 = vector.broadcast %54 : vector<1x128xf32> to vector<8x128xf32>
    %58 = arith.addf %56, %57 : vector<8x128xf32>
    %cst_24 = arith.constant 0.00999999977 : f32
    %59 = vector.broadcast %cst_24 : f32 to vector<8x128xf32>
    %60 = arith.mulf %59, %58 : vector<8x128xf32>
    %61 = arith.maximumf %58, %60 : vector<8x128xf32>
    %c0_25 = arith.constant 0 : index
    %c0_26 = arith.constant 0 : index
    %62 = vector.load %arg5[%c0_25, %c0_26] : memref<128x128xbf16, #tpu.memory_space<vmem>>, vector<128x128xbf16>
    %c0_27 = arith.constant 0 : index
    %c0_28 = arith.constant 0 : index
    %63 = vector.load %arg6[%c0_27, %c0_28] : memref<1x128xf32, #tpu.memory_space<vmem>>, vector<1x128xf32>
    %64 = arith.truncf %61 : vector<8x128xf32> to vector<8x128xbf16>
    %cst_29 = arith.constant dense<0.000000e+00> : vector<8x128xf32>
    %65 = tpu.matmul %64, %62, %cst_29 {dimension_numbers = #tpu.dot_dimension_numbers<[1], [0], [0], [1], [0, 0, 1, 1], [], []>} : vector<8x128xbf16>, vector<128x128xbf16>, vector<8x128xf32> -> vector<8x128xf32>
    %66 = vector.broadcast %63 : vector<1x128xf32> to vector<8x128xf32>
    %67 = arith.addf %65, %66 : vector<8x128xf32>
    %68 = arith.negf %67 : vector<8x128xf32>
    %69 = math.exp %68 : vector<8x128xf32>
    %cst_30 = arith.constant 1.000000e+00 : f32
    %70 = vector.broadcast %cst_30 : f32 to vector<8x128xf32>
    %71 = arith.addf %70, %69 : vector<8x128xf32>
    %72 = arith.divf %70, %71 : vector<8x128xf32>
    %c0_31 = arith.constant 0 : index
    %c0_32 = arith.constant 0 : index
    %73 = vector.load %arg7[%c0_31, %c0_32] : memref<8x128xf32, #tpu.memory_space<vmem>>, vector<8x128xf32>
    tpu.vector_store %arg7[%c0_31, %c0_32], %72 {strides = array<i32>} : memref<8x128xf32, #tpu.memory_space<vmem>>, vector<8x128xf32>,
    return
  }
}

</mosaic_0001>

<llo_original>
// kernel: base_decoder_forward.2
$region0: #{base_decoder_forward.2}
  #allocation0 [shape = 'u32[]', space=smem, size = 0x4, offset = 0x4, fixed_abs, tag = 'smem constant byte address 0x4 - core index']
  #allocation1 [shape = 'u32[144,128]{1,0:T(1,128)}', space=vmem, size = 0x12000, scoped, tag = 'internal scratch']
  #allocation2 [shape = 'u32[2048]{0}', space=vmem, size = 0x2000, scoped, tag = 'scoped memory for base_decoder_forward.2']
  #allocation3 [shape = 'u32[2048]{0}', space=vmem, size = 0x2000, scoped, tag = 'scoped memory for base_decoder_forward.2']
  #allocation4 [shape = 'u32[2048]{0}', space=vmem, size = 0x2000, scoped, tag = 'scoped memory for base_decoder_forward.2']
  #allocation5 [shape = 'u32[2048]{0}', space=vmem, size = 0x2000, scoped, tag = 'scoped memory for base_decoder_forward.2']
  #allocation6 [shape = 'u32[2048]{0}', space=vmem, size = 0x2000, scoped, tag = 'scoped memory for base_decoder_forward.2']
  %s0 = inlined_call_operand.hbm [shape: bf16[128,128], index: 0, kind: input, shape index: {}]
  %s1 = inlined_call_operand.vmem [shape: f32[2,128], index: 1, kind: input, shape index: {}]
  %s2 = inlined_call_operand.hbm [shape: bf16[128,128], index: 2, kind: input, shape index: {}]
  %s3 = inlined_call_operand.vmem [shape: f32[2,128], index: 3, kind: input, shape index: {}]
  %s4 = inlined_call_operand.hbm [shape: bf16[128,128], index: 4, kind: input, shape index: {}]
  %s5 = inlined_call_operand.vmem [shape: f32[1,128], index: 5, kind: input, shape index: {}]
  %s6 = inlined_call_operand.vmem [shape: f32[8,32], index: 6, kind: input, shape index: {}]
  %s7 = inlined_call_operand.<no memory space> [shape: f32[], index: 7, kind: input, shape index: {}]
  %s8 = inlined_call_operand.hbm [shape: f32[8,128], index: 8, kind: output, shape index: {}]
  %s9 = sld [smem:[#allocation0]]
  $region50: #{base_decoder_forward.2} parent=0
    _
  %s11 = ssub.s32 1, %s9
  %s12 = scalar_select 0, %s11, %s9
  %v13 = vstv %s7
  $region1: #{base_decoder_forward.2} parent=0
    #allocation7 [shape = 'u8[32768]{0}', space=vmem, size = 0x8000, scoped, tag = 'input window, operand 1, single buffered']
    #allocation8 [shape = 's32[1]{0}', space=sflag, size = 0x4, scoped, tag = 'scoped memory for base_decoder_forward.2']
    #allocation9 [shape = 's32[1]{0}', space=sflag, size = 0x4, scoped, tag = 'scoped memory for base_decoder_forward.2']
    #allocation10 [shape = 'u8[32768]{0}', space=vmem, size = 0x8000, scoped, tag = 'input window, operand 3, single buffered']
    #allocation11 [shape = 's32[1]{0}', space=sflag, size = 0x4, scoped, tag = 'scoped memory for base_decoder_forward.2']
    #allocation12 [shape = 'u8[32768]{0}', space=vmem, size = 0x8000, scoped, tag = 'input window, operand 5, single buffered']
    #allocation13 [shape = 'u8[4096]{0}', space=vmem, size = 0x1000, scoped, tag = 'output window, operand 0, single buffered']
    #allocation14 [shape = 'u8[4096]{0}', space=vmem, size = 0x1000, dematerialized = true, scoped, tag = 'FusionAdapter Buffer %fusion.1 = f32[8,128]{1,0:T(8,128)} fusion(%param_6.1, %param_7), kind=kLoop, calls=%fused_computation.1.clone, metadata={op_name="jit(base_decoder_forward)/scatter" stack_frame_id=9}']
    %14 = vsyncpa [#allocation8], 0
    %15 = vsyncpa [#allocation11], 0
    %16 = vsyncpa [#allocation9], 0
    // Predicated region
    $region2: #{base_decoder_forward.2} parent=1 // pred_check
      _
    $region3: #{base_decoder_forward.2} parent=1 // pred_check_branch
      %18 = sbr.rel (0) target = $region5
    $region4: #{base_decoder_forward.2} parent=1 // pred_region
      _
    $region5: #{base_decoder_forward.2} parent=1 // pred_fallthru
      _
    // Predicated region
    $region6: #{base_decoder_forward.2} parent=1 // pred_check
      _
    $region7: #{base_decoder_forward.2} parent=1 // pred_check_branch
      %20 = sbr.rel (0) target = $region9
    $region8: #{base_decoder_forward.2} parent=1 // pred_region
      %s22 = ssub.s32 1024, 1024
      %23 = vsyncadd [#allocation8], %s22
      %s24 = sshll.u32 [#allocation7], 4
      %s25 = int_to_ptr.vmem [resolvable:$true] %s24
      %30 = dma.hbm_to_vmem [thread:$0]  %s0, 1024, %s25, [#allocation8], 64, 64, 4
    $region9: #{base_decoder_forward.2} parent=1 // pred_fallthru
      _
    // Predicated region
    $region10: #{base_decoder_forward.2} parent=1 // pred_check
      _
    $region11: #{base_decoder_forward.2} parent=1 // pred_check_branch
      %32 = sbr.rel (0) target = $region13
    $region12: #{base_decoder_forward.2} parent=1 // pred_region
      _
    $region13: #{base_decoder_forward.2} parent=1 // pred_fallthru
      _
    // Predicated region
    $region14: #{base_decoder_forward.2} parent=1 // pred_check
      _
    $region15: #{base_decoder_forward.2} parent=1 // pred_check_branch
      %34 = sbr.rel (0) target = $region17
    $region16: #{base_decoder_forward.2} parent=1 // pred_region
      %s36 = ssub.s32 1024, 1024
      %37 = vsyncadd [#allocation11], %s36
      %s38 = sshll.u32 [#allocation10], 4
      %s39 = int_to_ptr.vmem [resolvable:$true] %s38
      %44 = dma.hbm_to_vmem [thread:$0]  %s2, 1024, %s39, [#allocation11], 64, 64, 4
    $region17: #{base_decoder_forward.2} parent=1 // pred_fallthru
      _
    // Predicated region
    $region18: #{base_decoder_forward.2} parent=1 // pred_check
      _
    $region19: #{base_decoder_forward.2} parent=1 // pred_check_branch
      %46 = sbr.rel (0) target = $region21
    $region20: #{base_decoder_forward.2} parent=1 // pred_region
      _
    $region21: #{base_decoder_forward.2} parent=1 // pred_fallthru
      _
    // Predicated region
    $region22: #{base_decoder_forward.2} parent=1 // pred_check
      _
    $region23: #{base_decoder_forward.2} parent=1 // pred_check_branch
      %48 = sbr.rel (0) target = $region25
    $region24: #{base_decoder_forward.2} parent=1 // pred_region
      %s50 = ssub.s32 1024, 1024
      %51 = vsyncadd [#allocation11], %s50
      %s52 = sshll.u32 [#allocation12], 4
      %s53 = int_to_ptr.vmem [resolvable:$true] %s52
      %58 = dma.hbm_to_vmem [thread:$0]  %s4, 1024, %s53, [#allocation11], 64, 64, 4
    $region25: #{base_decoder_forward.2} parent=1 // pred_fallthru
      _
    // Predicated region
    $region26: #{base_decoder_forward.2} parent=1 // pred_check
      _
    $region27: #{base_decoder_forward.2} parent=1 // pred_check_branch
      %60 = sbr.rel (0) target = $region29
    $region28: #{base_decoder_forward.2} parent=1 // pred_region
      _
    $region29: #{base_decoder_forward.2} parent=1 // pred_fallthru
      _
    // Predicated region
    $region30: #{base_decoder_forward.2} parent=1 // pred_check
      _
    $region31: #{base_decoder_forward.2} parent=1 // pred_check_branch
      %62 = sbr.rel (0) target = $region33
    $region32: #{base_decoder_forward.2} parent=1 // pred_region
      %63 = dma.done [#allocation8], 1024
    $region33: #{base_decoder_forward.2} parent=1 // pred_fallthru
      _
    // Predicated region
    $region34: #{base_decoder_forward.2} parent=1 // pred_check
      _
    $region35: #{base_decoder_forward.2} parent=1 // pred_check_branch
      %65 = sbr.rel (0) target = $region37
    $region36: #{base_decoder_forward.2} parent=1 // pred_region
      %66 = dma.done [#allocation11], 1024
    $region37: #{base_decoder_forward.2} parent=1 // pred_fallthru
      _
    // Predicated region
    $region38: #{base_decoder_forward.2} parent=1 // pred_check
      _
    $region39: #{base_decoder_forward.2} parent=1 // pred_check_branch
      %68 = sbr.rel (0) target = $region41
    $region40: #{base_decoder_forward.2} parent=1 // pred_region
      %69 = dma.done [#allocation11], 1024
    $region41: #{base_decoder_forward.2} parent=1 // pred_fallthru
      _
    %v70 = vld [vmem:[%s6] sm:$0xff]
    %v71 = vlaneseq
    %v72 = vand.u32 %v71, 127
    %vm74 = vcmp.lt.s32.totalorder %v72, 32
    %v75 = vsel %vm74, %v70, %v13
    %s77 = ssub.s32 256, 1
    %78 = vst [vmem:[#allocation14] sm:%s77] %v75
    %v80 = vld [vmem:[#allocation14] sm:$0xff]
    %v81 = vld [vmem:[#allocation7] sm:$0xf]
    %v82 = vld [vmem:[#allocation7 + $0x4] sm:$0xf]
    %v83 = vld [vmem:[#allocation7 + $0x8] sm:$0xf]
    %v84 = vld [vmem:[#allocation7 + $0xc] sm:$0xf]
    %v85 = vld [vmem:[#allocation7 + $0x10] sm:$0xf]
    %v86 = vld [vmem:[#allocation7 + $0x14] sm:$0xf]
    %v87 = vld [vmem:[#allocation7 + $0x18] sm:$0xf]
    %v88 = vld [vmem:[#allocation7 + $0x1c] sm:$0xf]
    %v89 = vld [vmem:[#allocation7 + $0x20] sm:$0xf]
    %v90 = vld [vmem:[#allocation7 + $0x24] sm:$0xf]
    %v91 = vld [vmem:[#allocation7 + $0x28] sm:$0xf]
    %v92 = vld [vmem:[#allocation7 + $0x2c] sm:$0xf]
    %v93 = vld [vmem:[#allocation7 + $0x30] sm:$0xf]
    %v94 = vld [vmem:[#allocation7 + $0x34] sm:$0xf]
    %v95 = vld [vmem:[#allocation7 + $0x38] sm:$0xf]
    %v96 = vld [vmem:[#allocation7 + $0x3c] sm:$0xf]
    %v97 = vld [vmem:[%s1] sm:$0x3]
    %v98 = vpack.c.bf16 %v80, %v80
    %v115 = vunpack.c.l.b16 %v81
    %v116 = vunpack.c.l.b16 %v82
    %v117 = vunpack.c.l.b16 %v83
    %v118 = vunpack.c.l.b16 %v84
    %v119 = vunpack.c.l.b16 %v85
    %v120 = vunpack.c.l.b16 %v86
    %v121 = vunpack.c.l.b16 %v87
    %v122 = vunpack.c.l.b16 %v88
    %v123 = vunpack.c.l.b16 %v89
    %v124 = vunpack.c.l.b16 %v90
    %v125 = vunpack.c.l.b16 %v91
    %v126 = vunpack.c.l.b16 %v92
    %v127 = vunpack.c.l.b16 %v93
    %v128 = vunpack.c.l.b16 %v94
    %v129 = vunpack.c.l.b16 %v95
    %v130 = vunpack.c.l.b16 %v96
    %v131 = vpack.c.b16 %v116, %v115
    %v132 = vpack.c.b16 %v118, %v117
    %v133 = vpack.c.b16 %v120, %v119
    %v134 = vpack.c.b16 %v122, %v121
    %v135 = vpack.c.b16 %v124, %v123
    %v136 = vpack.c.b16 %v126, %v125
    %v137 = vpack.c.b16 %v128, %v127
    %v138 = vpack.c.b16 %v130, %v129
    %147 = vmatprep.subr.bf16.mxu0 0
    %148 = vmatpush1.bf16.msra.mxu0 %v138
    %149 = vmatprep.subr.bf16.mxu0 0
    %150 = vmatpush1.bf16.msra.mxu0 %v137
    %151 = vmatprep.subr.bf16.mxu0 0
    %152 = vmatpush1.bf16.msra.mxu0 %v136
    %153 = vmatprep.subr.bf16.mxu0 0
    %154 = vmatpush1.bf16.msra.mxu0 %v135
    %155 = vmatprep.subr.bf16.mxu0 0
    %156 = vmatpush1.bf16.msra.mxu0 %v134
    %157 = vmatprep.subr.bf16.mxu0 0
    %158 = vmatpush1.bf16.msra.mxu0 %v133
    %159 = vmatprep.subr.bf16.mxu0 0
    %160 = vmatpush1.bf16.msra.mxu0 %v132
    %161 = vmatprep.subr.bf16.mxu0 0
    %162 = vmatpush1.bf16.msra.mxu0 %v131
    %163 = vmatprep.subr.bf16.mxu0 0
    %164 = vmatpush2.bf16.msra.mxu0 0
    %165 = vmatprep.subr.bf16.mxu0 0
    %166 = vmatpush2.bf16.msra.mxu0 0
    %167 = vmatprep.subr.bf16.mxu0 0
    %168 = vmatpush2.bf16.msra.mxu0 0
    %169 = vmatprep.subr.bf16.mxu0 0
    %170 = vmatpush2.bf16.msra.mxu0 0
    %171 = vmatprep.subr.bf16.mxu0 0
    %172 = vmatpush2.bf16.msra.mxu0 0
    %173 = vmatprep.subr.bf16.mxu0 0
    %174 = vmatpush2.bf16.msra.mxu0 0
    %175 = vmatprep.subr.bf16.mxu0 0
    %176 = vmatpush2.bf16.msra.mxu0 0
    %177 = vmatprep.subr.bf16.mxu0 0
    %178 = vmatpush2.bf16.msra.mxu0 0
    %179 = vmatprep.mubr.bf16.mxu0 0
    %180 = vmatmul.mubr.bf16.gmra.mxu0 %v98
    %v181 = vpop.f32.mrf.mxu0
    %v182 = vadd.f32 0.0, %v181
    %v183 = vpop.f32.mrf.mxu0
    %v184 = vpop.f32.mrf.mxu0
    %v185 = vpop.f32.mrf.mxu0
    %186 = vdwg.mxu0
    %vm187 = vcmask 64512
    %v189 = vsel %vm187, 1.0, 0
    %191 = vmatprep.subr.mxu0 0.0
    %192 = vmatpush1.msra.mxu0 0.0
    %193 = vmatprep.subr.mxu0 0.0
    %194 = vmatpush1.msra.mxu0 0.0
    %195 = vmatprep.subr.mxu0 0.0
    %196 = vmatpush1.msra.mxu0 0.0
    %197 = vmatprep.subr.mxu0 0.0
    %198 = vmatpush1.msra.mxu0 0.0
    %199 = vmatprep.subr.mxu0 0.0
    %200 = vmatpush1.msra.mxu0 0.0
    %201 = vmatprep.subr.mxu0 0.0
    %202 = vmatpush1.msra.mxu0 0.0
    %203 = vmatprep.subr.mxu0 0.0
    %204 = vmatpush1.msra.mxu0 0.0
    %205 = vmatprep.subr.mxu0 0.0
    %206 = vmatpush1.msra.mxu0 0.0
    %207 = vmatprep.subr.mxu0 0.0
    %208 = vmatpush1.msra.mxu0 0.0
    %209 = vmatprep.subr.mxu0 0.0
    %210 = vmatpush1.msra.mxu0 0.0
    %211 = vmatprep.subr.mxu0 0.0
    %212 = vmatpush1.msra.mxu0 0.0
    %213 = vmatprep.subr.mxu0 0.0
    %214 = vmatpush1.msra.mxu0 0.0
    %215 = vmatprep.subr.mxu0 0.0
    %216 = vmatpush1.msra.mxu0 0.0
    %217 = vmatprep.subr.mxu0 0.0
    %218 = vmatpush1.msra.mxu0 0.0
    %219 = vmatprep.subr.mxu0 0.0
    %220 = vmatpush1.msra.mxu0 0.0
    %221 = vmatprep.subr.mxu0 0.0
    %222 = vmatpush1.msra.mxu0 %v182
    %223 = vmatprep.subr.mxu0 0.0
    %224 = vmatpush2.msra.mxu0 0.0
    %225 = vmatprep.subr.mxu0 0.0
    %226 = vmatpush2.msra.mxu0 0.0
    %227 = vmatprep.subr.mxu0 0.0
    %228 = vmatpush2.msra.mxu0 0.0
    %229 = vmatprep.subr.mxu0 0.0
    %230 = vmatpush2.msra.mxu0 0.0
    %231 = vmatprep.subr.mxu0 0.0
    %232 = vmatpush2.msra.mxu0 0.0
    %233 = vmatprep.subr.mxu0 0.0
    %234 = vmatpush2.msra.mxu0 0.0
    %235 = vmatprep.subr.mxu0 0.0
    %236 = vmatpush2.msra.mxu0 0.0
    %237 = vmatprep.subr.mxu0 0.0
    %238 = vmatpush2.msra.mxu0 0.0
    %239 = vmatprep.subr.mxu0 0.0
    %240 = vmatpush2.msra.mxu0 0.0
    %241 = vmatprep.subr.mxu0 0.0
    %242 = vmatpush2.msra.mxu0 0.0
    %243 = vmatprep.subr.mxu0 0.0
    %244 = vmatpush2.msra.mxu0 0.0
    %245 = vmatprep.subr.mxu0 0.0
    %246 = vmatpush2.msra.mxu0 0.0
    %247 = vmatprep.subr.mxu0 0.0
    %248 = vmatpush2.msra.mxu0 0.0
    %249 = vmatprep.subr.mxu0 0.0
    %250 = vmatpush2.msra.mxu0 0.0
    %251 = vmatprep.subr.mxu0 0.0
    %252 = vmatpush2.msra.mxu0 0.0
    %253 = vmatprep.subr.mxu0 0.0
    %254 = vmatpush2.msra.mxu0 0.0
    %255 = vmatprep.mubr.f32.mxu0 0.0
    %256 = vmatmul.mubr.f32.gmra.mxu0 %v189
    %v257 = vpop.f32.mrf.mxu0
    %v258 = vadd.f32 0.0, %v257
    %v259 = vpop.f32.mrf.mxu0
    %260 = vdwg.mxu0
    %v261 = vmul.f32 %v182, %v182
    %262 = vmatprep.subr.mxu0 0.0
    %263 = vmatpush1.msra.mxu0 0.0
    %264 = vmatprep.subr.mxu0 0.0
    %265 = vmatpush1.msra.mxu0 0.0
    %266 = vmatprep.subr.mxu0 0.0
    %267 = vmatpush1.msra.mxu0 0.0
    %268 = vmatprep.subr.mxu0 0.0
    %269 = vmatpush1.msra.mxu0 0.0
    %270 = vmatprep.subr.mxu0 0.0
    %271 = vmatpush1.msra.mxu0 0.0
    %272 = vmatprep.subr.mxu0 0.0
    %273 = vmatpush1.msra.mxu0 0.0
    %274 = vmatprep.subr.mxu0 0.0
    %275 = vmatpush1.msra.mxu0 0.0
    %276 = vmatprep.subr.mxu0 0.0
    %277 = vmatpush1.msra.mxu0 0.0
    %278 = vmatprep.subr.mxu0 0.0
    %279 = vmatpush1.msra.mxu0 0.0
    %280 = vmatprep.subr.mxu0 0.0
    %281 = vmatpush1.msra.mxu0 0.0
    %282 = vmatprep.subr.mxu0 0.0
    %283 = vmatpush1.msra.mxu0 0.0
    %284 = vmatprep.subr.mxu0 0.0
    %285 = vmatpush1.msra.mxu0 0.0
    %286 = vmatprep.subr.mxu0 0.0
    %287 = vmatpush1.msra.mxu0 0.0
    %288 = vmatprep.subr.mxu0 0.0
    %289 = vmatpush1.msra.mxu0 0.0
    %290 = vmatprep.subr.mxu0 0.0
    %291 = vmatpush1.msra.mxu0 0.0
    %292 = vmatprep.subr.mxu0 0.0
    %293 = vmatpush1.msra.mxu0 %v261
    %294 = vmatprep.subr.mxu0 0.0
    %295 = vmatpush2.msra.mxu0 0.0
    %296 = vmatprep.subr.mxu0 0.0
    %297 = vmatpush2.msra.mxu0 0.0
    %298 = vmatprep.subr.mxu0 0.0
    %299 = vmatpush2.msra.mxu0 0.0
    %300 = vmatprep.subr.mxu0 0.0
    %301 = vmatpush2.msra.mxu0 0.0
    %302 = vmatprep.subr.mxu0 0.0
    %303 = vmatpush2.msra.mxu0 0.0
    %304 = vmatprep.subr.mxu0 0.0
    %305 = vmatpush2.msra.mxu0 0.0
    %306 = vmatprep.subr.mxu0 0.0
    %307 = vmatpush2.msra.mxu0 0.0
    %308 = vmatprep.subr.mxu0 0.0
    %309 = vmatpush2.msra.mxu0 0.0
    %310 = vmatprep.subr.mxu0 0.0
    %311 = vmatpush2.msra.mxu0 0.0
    %312 = vmatprep.subr.mxu0 0.0
    %313 = vmatpush2.msra.mxu0 0.0
    %314 = vmatprep.subr.mxu0 0.0
    %315 = vmatpush2.msra.mxu0 0.0
    %316 = vmatprep.subr.mxu0 0.0
    %317 = vmatpush2.msra.mxu0 0.0
    %318 = vmatprep.subr.mxu0 0.0
    %319 = vmatpush2.msra.mxu0 0.0
    %320 = vmatprep.subr.mxu0 0.0
    %321 = vmatpush2.msra.mxu0 0.0
    %322 = vmatprep.subr.mxu0 0.0
    %323 = vmatpush2.msra.mxu0 0.0
    %324 = vmatprep.subr.mxu0 0.0
    %325 = vmatpush2.msra.mxu0 0.0
    %326 = vmatprep.mubr.f32.mxu0 0.0
    %327 = vmatmul.mubr.f32.gmra.mxu0 %v189
    %v328 = vpop.f32.mrf.mxu0
    %v329 = vadd.f32 0.0, %v328
    %v330 = vpop.f32.mrf.mxu0
    %331 = vdwg.mxu0
    %v332 = vmul.f32 %v258, 0.125
    %v333 = vmul.f32 %v329, 0.125
    %v334 = vmul.f32 %v332, %v332
    %v335 = vsub.f32 %v333, %v334
    %v336 = vmax.f32 %v335, 0.0
    %v337 = vadd.f32 %v336, 1e-05
    %v338 = vrsqrt.pop %v337
    %v339 = vmul.f32 %v97, %v338
    %v340 = vmul.f32 %v332, %v339
    %v342 = vrot.slane %v340, 7
    %v344 = vsub.f32 %v97, %v342
    %v345 = vlaneseq
    %v346 = vshrl.u32 %v345, 7
    %v347 = vsub.s32 0, %v346
    %v348 = vrot.slane %v339, %v347
    %v349 = vmul.f32 %v182, %v348
    %v350 = vlaneseq
    %v351 = vshrl.u32 %v350, 7
    %v352 = vsub.s32 1, %v351
    %v353 = vrot.slane %v344, %v352
    %v354 = vadd.f32 %v349, %v353
    %v355 = vmul.f32 %v354, 0.01
    %v356 = vmax.f32 %v354, %v355
    %v357 = vld [vmem:[#allocation10] sm:$0xf]
    %v358 = vld [vmem:[#allocation10 + $0x4] sm:$0xf]
    %v359 = vld [vmem:[#allocation10 + $0x8] sm:$0xf]
    %v360 = vld [vmem:[#allocation10 + $0xc] sm:$0xf]
    %v361 = vld [vmem:[#allocation10 + $0x10] sm:$0xf]
    %v362 = vld [vmem:[#allocation10 + $0x14] sm:$0xf]
    %v363 = vld [vmem:[#allocation10 + $0x18] sm:$0xf]
    %v364 = vld [vmem:[#allocation10 + $0x1c] sm:$0xf]
    %v365 = vld [vmem:[#allocation10 + $0x20] sm:$0xf]
    %v366 = vld [vmem:[#allocation10 + $0x24] sm:$0xf]
    %v367 = vld [vmem:[#allocation10 + $0x28] sm:$0xf]
    %v368 = vld [vmem:[#allocation10 + $0x2c] sm:$0xf]
    %v369 = vld [vmem:[#allocation10 + $0x30] sm:$0xf]
    %v370 = vld [vmem:[#allocation10 + $0x34] sm:$0xf]
    %v371 = vld [vmem:[#allocation10 + $0x38] sm:$0xf]
    %v372 = vld [vmem:[#allocation10 + $0x3c] sm:$0xf]
    %v373 = vld [vmem:[%s3] sm:$0x3]
    %v374 = vpack.c.bf16 %v356, %v356
    %v391 = vunpack.c.l.b16 %v357
    %v392 = vunpack.c.l.b16 %v358
    %v393 = vunpack.c.l.b16 %v359
    %v394 = vunpack.c.l.b16 %v360
    %v395 = vunpack.c.l.b16 %v361
    %v396 = vunpack.c.l.b16 %v362
    %v397 = vunpack.c.l.b16 %v363
    %v398 = vunpack.c.l.b16 %v364
    %v399 = vunpack.c.l.b16 %v365
    %v400 = vunpack.c.l.b16 %v366
    %v401 = vunpack.c.l.b16 %v367
    %v402 = vunpack.c.l.b16 %v368
    %v403 = vunpack.c.l.b16 %v369
    %v404 = vunpack.c.l.b16 %v370
    %v405 = vunpack.c.l.b16 %v371
    %v406 = vunpack.c.l.b16 %v372
    %v407 = vpack.c.b16 %v392, %v391
    %v408 = vpack.c.b16 %v394, %v393
    %v409 = vpack.c.b16 %v396, %v395
    %v410 = vpack.c.b16 %v398, %v397
    %v411 = vpack.c.b16 %v400, %v399
    %v412 = vpack.c.b16 %v402, %v401
    %v413 = vpack.c.b16 %v404, %v403
    %v414 = vpack.c.b16 %v406, %v405
    %423 = vmatprep.subr.bf16.mxu0 0
    %424 = vmatpush1.bf16.msra.mxu0 %v414
    %425 = vmatprep.subr.bf16.mxu0 0
    %426 = vmatpush1.bf16.msra.mxu0 %v413
    %427 = vmatprep.subr.bf16.mxu0 0
    %428 = vmatpush1.bf16.msra.mxu0 %v412
    %429 = vmatprep.subr.bf16.mxu0 0
    %430 = vmatpush1.bf16.msra.mxu0 %v411
    %431 = vmatprep.subr.bf16.mxu0 0
    %432 = vmatpush1.bf16.msra.mxu0 %v410
    %433 = vmatprep.subr.bf16.mxu0 0
    %434 = vmatpush1.bf16.msra.mxu0 %v409
    %435 = vmatprep.subr.bf16.mxu0 0
    %436 = vmatpush1.bf16.msra.mxu0 %v408
    %437 = vmatprep.subr.bf16.mxu0 0
    %438 = vmatpush1.bf16.msra.mxu0 %v407
    %439 = vmatprep.subr.bf16.mxu0 0
    %440 = vmatpush2.bf16.msra.mxu0 0
    %441 = vmatprep.subr.bf16.mxu0 0
    %442 = vmatpush2.bf16.msra.mxu0 0
    %443 = vmatprep.subr.bf16.mxu0 0
    %444 = vmatpush2.bf16.msra.mxu0 0
    %445 = vmatprep.subr.bf16.mxu0 0
    %446 = vmatpush2.bf16.msra.mxu0 0
    %447 = vmatprep.subr.bf16.mxu0 0
    %448 = vmatpush2.bf16.msra.mxu0 0
    %449 = vmatprep.subr.bf16.mxu0 0
    %450 = vmatpush2.bf16.msra.mxu0 0
    %451 = vmatprep.subr.bf16.mxu0 0
    %452 = vmatpush2.bf16.msra.mxu0 0
    %453 = vmatprep.subr.bf16.mxu0 0
    %454 = vmatpush2.bf16.msra.mxu0 0
    %455 = vmatprep.mubr.bf16.mxu0 0
    %456 = vmatmul.mubr.bf16.gmra.mxu0 %v374
    %v457 = vpop.f32.mrf.mxu0
    %v458 = vadd.f32 0.0, %v457
    %v459 = vpop.f32.mrf.mxu0
    %v460 = vpop.f32.mrf.mxu0
    %v461 = vpop.f32.mrf.mxu0
    %462 = vdwg.mxu0
    %463 = vmatprep.subr.mxu0 0.0
    %464 = vmatpush1.msra.mxu0 0.0
    %465 = vmatprep.subr.mxu0 0.0
    %466 = vmatpush1.msra.mxu0 0.0
    %467 = vmatprep.subr.mxu0 0.0
    %468 = vmatpush1.msra.mxu0 0.0
    %469 = vmatprep.subr.mxu0 0.0
    %470 = vmatpush1.msra.mxu0 0.0
    %471 = vmatprep.subr.mxu0 0.0
    %472 = vmatpush1.msra.mxu0 0.0
    %473 = vmatprep.subr.mxu0 0.0
    %474 = vmatpush1.msra.mxu0 0.0
    %475 = vmatprep.subr.mxu0 0.0
    %476 = vmatpush1.msra.mxu0 0.0
    %477 = vmatprep.subr.mxu0 0.0
    %478 = vmatpush1.msra.mxu0 0.0
    %479 = vmatprep.subr.mxu0 0.0
    %480 = vmatpush1.msra.mxu0 0.0
    %481 = vmatprep.subr.mxu0 0.0
    %482 = vmatpush1.msra.mxu0 0.0
    %483 = vmatprep.subr.mxu0 0.0
    %484 = vmatpush1.msra.mxu0 0.0
    %485 = vmatprep.subr.mxu0 0.0
    %486 = vmatpush1.msra.mxu0 0.0
    %487 = vmatprep.subr.mxu0 0.0
    %488 = vmatpush1.msra.mxu0 0.0
    %489 = vmatprep.subr.mxu0 0.0
    %490 = vmatpush1.msra.mxu0 0.0
    %491 = vmatprep.subr.mxu0 0.0
    %492 = vmatpush1.msra.mxu0 0.0
    %493 = vmatprep.subr.mxu0 0.0
    %494 = vmatpush1.msra.mxu0 %v458
    %495 = vmatprep.subr.mxu0 0.0
    %496 = vmatpush2.msra.mxu0 0.0
    %497 = vmatprep.subr.mxu0 0.0
    %498 = vmatpush2.msra.mxu0 0.0
    %499 = vmatprep.subr.mxu0 0.0
    %500 = vmatpush2.msra.mxu0 0.0
    %501 = vmatprep.subr.mxu0 0.0
    %502 = vmatpush2.msra.mxu0 0.0
    %503 = vmatprep.subr.mxu0 0.0
    %504 = vmatpush2.msra.mxu0 0.0
    %505 = vmatprep.subr.mxu0 0.0
    %506 = vmatpush2.msra.mxu0 0.0
    %507 = vmatprep.subr.mxu0 0.0
    %508 = vmatpush2.msra.mxu0 0.0
    %509 = vmatprep.subr.mxu0 0.0
    %510 = vmatpush2.msra.mxu0 0.0
    %511 = vmatprep.subr.mxu0 0.0
    %512 = vmatpush2.msra.mxu0 0.0
    %513 = vmatprep.subr.mxu0 0.0
    %514 = vmatpush2.msra.mxu0 0.0
    %515 = vmatprep.subr.mxu0 0.0
    %516 = vmatpush2.msra.mxu0 0.0
    %517 = vmatprep.subr.mxu0 0.0
    %518 = vmatpush2.msra.mxu0 0.0
    %519 = vmatprep.subr.mxu0 0.0
    %520 = vmatpush2.msra.mxu0 0.0
    %521 = vmatprep.subr.mxu0 0.0
    %522 = vmatpush2.msra.mxu0 0.0
    %523 = vmatprep.subr.mxu0 0.0
    %524 = vmatpush2.msra.mxu0 0.0
    %525 = vmatprep.subr.mxu0 0.0
    %526 = vmatpush2.msra.mxu0 0.0
    %527 = vmatprep.mubr.f32.mxu0 0.0
    %528 = vmatmul.mubr.f32.gmra.mxu0 %v189
    %v529 = vpop.f32.mrf.mxu0
    %v530 = vadd.f32 0.0, %v529
    %v531 = vpop.f32.mrf.mxu0
    %532 = vdwg.mxu0
    %v533 = vmul.f32 %v458, %v458
    %534 = vmatprep.subr.mxu0 0.0
    %535 = vmatpush1.msra.mxu0 0.0
    %536 = vmatprep.subr.mxu0 0.0
    %537 = vmatpush1.msra.mxu0 0.0
    %538 = vmatprep.subr.mxu0 0.0
    %539 = vmatpush1.msra.mxu0 0.0
    %540 = vmatprep.subr.mxu0 0.0
    %541 = vmatpush1.msra.mxu0 0.0
    %542 = vmatprep.subr.mxu0 0.0
    %543 = vmatpush1.msra.mxu0 0.0
    %544 = vmatprep.subr.mxu0 0.0
    %545 = vmatpush1.msra.mxu0 0.0
    %546 = vmatprep.subr.mxu0 0.0
    %547 = vmatpush1.msra.mxu0 0.0
    %548 = vmatprep.subr.mxu0 0.0
    %549 = vmatpush1.msra.mxu0 0.0
    %550 = vmatprep.subr.mxu0 0.0
    %551 = vmatpush1.msra.mxu0 0.0
    %552 = vmatprep.subr.mxu0 0.0
    %553 = vmatpush1.msra.mxu0 0.0
    %554 = vmatprep.subr.mxu0 0.0
    %555 = vmatpush1.msra.mxu0 0.0
    %556 = vmatprep.subr.mxu0 0.0
    %557 = vmatpush1.msra.mxu0 0.0
    %558 = vmatprep.subr.mxu0 0.0
    %559 = vmatpush1.msra.mxu0 0.0
    %560 = vmatprep.subr.mxu0 0.0
    %561 = vmatpush1.msra.mxu0 0.0
    %562 = vmatprep.subr.mxu0 0.0
    %563 = vmatpush1.msra.mxu0 0.0
    %564 = vmatprep.subr.mxu0 0.0
    %565 = vmatpush1.msra.mxu0 %v533
    %566 = vmatprep.subr.mxu0 0.0
    %567 = vmatpush2.msra.mxu0 0.0
    %568 = vmatprep.subr.mxu0 0.0
    %569 = vmatpush2.msra.mxu0 0.0
    %570 = vmatprep.subr.mxu0 0.0
    %571 = vmatpush2.msra.mxu0 0.0
    %572 = vmatprep.subr.mxu0 0.0
    %573 = vmatpush2.msra.mxu0 0.0
    %574 = vmatprep.subr.mxu0 0.0
    %575 = vmatpush2.msra.mxu0 0.0
    %576 = vmatprep.subr.mxu0 0.0
    %577 = vmatpush2.msra.mxu0 0.0
    %578 = vmatprep.subr.mxu0 0.0
    %579 = vmatpush2.msra.mxu0 0.0
    %580 = vmatprep.subr.mxu0 0.0
    %581 = vmatpush2.msra.mxu0 0.0
    %582 = vmatprep.subr.mxu0 0.0
    %583 = vmatpush2.msra.mxu0 0.0
    %584 = vmatprep.subr.mxu0 0.0
    %585 = vmatpush2.msra.mxu0 0.0
    %586 = vmatprep.subr.mxu0 0.0
    %587 = vmatpush2.msra.mxu0 0.0
    %588 = vmatprep.subr.mxu0 0.0
    %589 = vmatpush2.msra.mxu0 0.0
    %590 = vmatprep.subr.mxu0 0.0
    %591 = vmatpush2.msra.mxu0 0.0
    %592 = vmatprep.subr.mxu0 0.0
    %593 = vmatpush2.msra.mxu0 0.0
    %594 = vmatprep.subr.mxu0 0.0
    %595 = vmatpush2.msra.mxu0 0.0
    %596 = vmatprep.subr.mxu0 0.0
    %597 = vmatpush2.msra.mxu0 0.0
    %598 = vmatprep.mubr.f32.mxu0 0.0
    %599 = vmatmul.mubr.f32.gmra.mxu0 %v189
    %v600 = vpop.f32.mrf.mxu0
    %v601 = vadd.f32 0.0, %v600
    %v602 = vpop.f32.mrf.mxu0
    %603 = vdwg.mxu0
    %v604 = vmul.f32 %v530, 0.125
    %v605 = vmul.f32 %v601, 0.125
    %v606 = vmul.f32 %v604, %v604
    %v607 = vsub.f32 %v605, %v606
    %v608 = vmax.f32 %v607, 0.0
    %v609 = vadd.f32 %v608, 1e-05
    %v610 = vrsqrt.pop %v609
    %v611 = vmul.f32 %v373, %v610
    %v612 = vmul.f32 %v604, %v611
    %v614 = vrot.slane %v612, 7
    %v616 = vsub.f32 %v373, %v614
    %v617 = vlaneseq
    %v618 = vshrl.u32 %v617, 7
    %v619 = vsub.s32 0, %v618
    %v620 = vrot.slane %v611, %v619
    %v621 = vmul.f32 %v458, %v620
    %v622 = vlaneseq
    %v623 = vshrl.u32 %v622, 7
    %v624 = vsub.s32 1, %v623
    %v625 = vrot.slane %v616, %v624
    %v626 = vadd.f32 %v621, %v625
    %v627 = vmul.f32 %v626, 0.01
    %v628 = vmax.f32 %v626, %v627
    %v629 = vld [vmem:[#allocation12] sm:$0xf]
    %v630 = vld [vmem:[#allocation12 + $0x4] sm:$0xf]
    %v631 = vld [vmem:[#allocation12 + $0x8] sm:$0xf]
    %v632 = vld [vmem:[#allocation12 + $0xc] sm:$0xf]
    %v633 = vld [vmem:[#allocation12 + $0x10] sm:$0xf]
    %v634 = vld [vmem:[#allocation12 + $0x14] sm:$0xf]
    %v635 = vld [vmem:[#allocation12 + $0x18] sm:$0xf]
    %v636 = vld [vmem:[#allocation12 + $0x1c] sm:$0xf]
    %v637 = vld [vmem:[#allocation12 + $0x20] sm:$0xf]
    %v638 = vld [vmem:[#allocation12 + $0x24] sm:$0xf]
    %v639 = vld [vmem:[#allocation12 + $0x28] sm:$0xf]
    %v640 = vld [vmem:[#allocation12 + $0x2c] sm:$0xf]
    %v641 = vld [vmem:[#allocation12 + $0x30] sm:$0xf]
    %v642 = vld [vmem:[#allocation12 + $0x34] sm:$0xf]
    %v643 = vld [vmem:[#allocation12 + $0x38] sm:$0xf]
    %v644 = vld [vmem:[#allocation12 + $0x3c] sm:$0xf]
    %v645 = vld [vmem:[%s5] sm:$0x1]
    %v646 = vpack.c.bf16 %v628, %v628
    %v648 = vlaneseq
    %v649 = vshrl.u32 %v648, 7
    %v650 = vsub.s32 0, %v649
    %v651 = vrot.slane %v645, %v650
    %v669 = vunpack.c.l.b16 %v629
    %v670 = vunpack.c.l.b16 %v630
    %v671 = vunpack.c.l.b16 %v631
    %v672 = vunpack.c.l.b16 %v632
    %v673 = vunpack.c.l.b16 %v633
    %v674 = vunpack.c.l.b16 %v634
    %v675 = vunpack.c.l.b16 %v635
    %v676 = vunpack.c.l.b16 %v636
    %v677 = vunpack.c.l.b16 %v637
    %v678 = vunpack.c.l.b16 %v638
    %v679 = vunpack.c.l.b16 %v639
    %v680 = vunpack.c.l.b16 %v640
    %v681 = vunpack.c.l.b16 %v641
    %v682 = vunpack.c.l.b16 %v642
    %v683 = vunpack.c.l.b16 %v643
    %v684 = vunpack.c.l.b16 %v644
    %v685 = vpack.c.b16 %v670, %v669
    %v686 = vpack.c.b16 %v672, %v671
    %v687 = vpack.c.b16 %v674, %v673
    %v688 = vpack.c.b16 %v676, %v675
    %v689 = vpack.c.b16 %v678, %v677
    %v690 = vpack.c.b16 %v680, %v679
    %v691 = vpack.c.b16 %v682, %v681
    %v692 = vpack.c.b16 %v684, %v683
    %701 = vmatprep.subr.bf16.mxu0 0
    %702 = vmatpush1.bf16.msra.mxu0 %v692
    %703 = vmatprep.subr.bf16.mxu0 0
    %704 = vmatpush1.bf16.msra.mxu0 %v691
    %705 = vmatprep.subr.bf16.mxu0 0
    %706 = vmatpush1.bf16.msra.mxu0 %v690
    %707 = vmatprep.subr.bf16.mxu0 0
    %708 = vmatpush1.bf16.msra.mxu0 %v689
    %709 = vmatprep.subr.bf16.mxu0 0
    %710 = vmatpush1.bf16.msra.mxu0 %v688
    %711 = vmatprep.subr.bf16.mxu0 0
    %712 = vmatpush1.bf16.msra.mxu0 %v687
    %713 = vmatprep.subr.bf16.mxu0 0
    %714 = vmatpush1.bf16.msra.mxu0 %v686
    %715 = vmatprep.subr.bf16.mxu0 0
    %716 = vmatpush1.bf16.msra.mxu0 %v685
    %717 = vmatprep.subr.bf16.mxu0 0
    %718 = vmatpush2.bf16.msra.mxu0 0
    %719 = vmatprep.subr.bf16.mxu0 0
    %720 = vmatpush2.bf16.msra.mxu0 0
    %721 = vmatprep.subr.bf16.mxu0 0
    %722 = vmatpush2.bf16.msra.mxu0 0
    %723 = vmatprep.subr.bf16.mxu0 0
    %724 = vmatpush2.bf16.msra.mxu0 0
    %725 = vmatprep.subr.bf16.mxu0 0
    %726 = vmatpush2.bf16.msra.mxu0 0
    %727 = vmatprep.subr.bf16.mxu0 0
    %728 = vmatpush2.bf16.msra.mxu0 0
    %729 = vmatprep.subr.bf16.mxu0 0
    %730 = vmatpush2.bf16.msra.mxu0 0
    %731 = vmatprep.subr.bf16.mxu0 0
    %732 = vmatpush2.bf16.msra.mxu0 0
    %733 = vmatprep.mubr.bf16.mxu0 0
    %734 = vmatmul.mubr.bf16.gmra.mxu0 %v646
    %v735 = vpop.f32.mrf.mxu0
    %v736 = vadd.f32 %v651, %v735
    %v737 = vpop.f32.mrf.mxu0
    %v738 = vpop.f32.mrf.mxu0
    %v739 = vpop.f32.mrf.mxu0
    %740 = vdwg.mxu0
    %v741 = vxor.u32 %v736, 2147483648
    %v742 = vmul.f32 %v741, 1.442695
    %v743 = vpow.pop %v742
    %v744 = vadd.f32 %v743, 1.0
    %v745 = vrcp.pop %v744
    %v746 = vmul.f32 1.0, %v745
    %747 = vst [vmem:[#allocation13] sm:$0xff] %v746
    // Predicated region
    $region42: #{base_decoder_forward.2} parent=1 // pred_check
      _
    $region43: #{base_decoder_forward.2} parent=1 // pred_check_branch
      %749 = sbr.rel (0) target = $region45
    $region44: #{base_decoder_forward.2} parent=1 // pred_region
      %s751 = ssub.s32 128, 128
      %752 = vsyncadd [#allocation9], %s751
      %s754 = sshll.u32 [#allocation13], 4
      %s755 = int_to_ptr.vmem [resolvable:$true] %s754
      %757 = dma.vmem_to_hbm [thread:$0]  %s755, 128, %s8, [#allocation9]
    $region45: #{base_decoder_forward.2} parent=1 // pred_fallthru
      _
    // Predicated region
    $region46: #{base_decoder_forward.2} parent=1 // pred_check
      _
    $region47: #{base_decoder_forward.2} parent=1 // pred_check_branch
      %759 = sbr.rel (0) target = $region49
    $region48: #{base_decoder_forward.2} parent=1 // pred_region
      %760 = dma.done [#allocation9], 128
    $region49: #{base_decoder_forward.2} parent=1 // pred_fallthru
      _
    %761 = vsyncpa [#allocation8], 1
    %762 = vsyncpa [#allocation11], 1
    %763 = vsyncpa [#allocation9], 1

</llo_original>
